<compile_context>
chip_gen: v7x
topology: tpu7x:2x2x1
jax: 0.10.0
libtpu: 0.0.40
codegen_flags: <defaults>
</compile_context>

<pallas_src>
import functools

import jax
import jax.numpy as jnp
from jax.experimental import pallas as pl
from jax.experimental.pallas import tpu as pltpu

H1 = 264        # fc1 out features (from the PyTorch spec)
H2 = 128        # fc2 out features
H1_PAD = 384    # 264 padded up to a multiple of 128
OUT_PAD = 128   # fc3 weight padded to a full MXU lane width (store is (tb,1))


def _round_up(n, m):
    return ((n + m - 1) // m) * m


# ---------------------------------------------------------------------------
# Fused kernel: build one-hot+numeric+bias activation row (bf16) ->
# fc1(+b1 folded)+ReLU -> fc2(+b2 folded)+ReLU -> fc3 + b3 -> (tb, 1) store.
# ---------------------------------------------------------------------------
def _net_kernel(x_ref, w1_ref, w2_ref, w3_ref, b3_ref, o_ref,
                *, n_tok, vocab, feat_lanes):
    x = x_ref[...]                                  # (TB, S) int32
    tb = x.shape[0]

    # Per-token one-hot segments, built directly in bf16 (no f32 pass / cast).
    iota_v = jax.lax.broadcasted_iota(jnp.int32, (tb, vocab), 1)
    pieces = [(iota_v == x[:, j:j + 1]).astype(jnp.bfloat16)     # (TB, vocab)
              for j in range(n_tok)]                             # static, small
    pieces.append(x[:, n_tok:n_tok + 3].astype(jnp.bfloat16))    # numeric feats
    pieces.append(jnp.ones((tb, 1), jnp.bfloat16))               # bias carrier lane
    pad = feat_lanes - (n_tok * vocab + 3 + 1)
    if pad:
        pieces.append(jnp.zeros((tb, pad), jnp.bfloat16))
    a = jnp.concatenate(pieces, axis=1)                          # (TB, feat_lanes) bf16

    # fc1 (+ b1 folded into w1 via the bias lane) + ReLU
    h1 = jnp.maximum(
        jnp.dot(a, w1_ref[...], preferred_element_type=jnp.float32), 0.0)
    h1 = h1.astype(jnp.bfloat16)
    # fc2 (+ b2 folded via constant-1 lane H1 of h1) + ReLU
    h2 = jnp.maximum(
        jnp.dot(h1, w2_ref[...], preferred_element_type=jnp.float32), 0.0)
    h2 = h2.astype(jnp.bfloat16)
    # fc3: full-width MXU push, but only lane 0 is real -> compact (tb, 1) store
    h3 = jnp.dot(h2, w3_ref[...], preferred_element_type=jnp.float32)  # (TB, 128)
    o_ref[...] = h3[:, :1] + b3_ref[...]


# ---------------------------------------------------------------------------
# One-time, batch-independent parameter repack (fold embedding + b1 + b2 into
# the fused weights, pad K/H1 to multiples of 128, cast matmul operands bf16).
# ---------------------------------------------------------------------------
def prepare_params(params, *, n_tok, vocab, emb_dim):
    emb = params["embedding"].astype(jnp.float32)          # (vocab, emb_dim)
    w1, b1 = params["w1"], params["b1"]                    # (n_tok*d + 3, 264), (264,)
    w2, b2 = params["w2"], params["b2"]                    # (264, 128), (128,)
    w3, b3 = params["w3"], params["b3"]                    # (128, 1), (1,)

    num_base = n_tok * vocab
    k_real = num_base + 3 + 1                              # + constant-1 bias lane
    feat_lanes = _round_up(k_real, 128)                    # 256 for the example

    # Fold embedding into fc1: row (j*V + v) = emb[v] @ W1[j*d:(j+1)*d, :]
    w1_tok = w1[: n_tok * emb_dim].reshape(n_tok, emb_dim, H1)
    fused = jnp.einsum("vd,jdh->jvh", emb, w1_tok).reshape(num_base, H1)
    w1_num = w1[n_tok * emb_dim:]                          # (3, 264) numeric rows
    bias_row = b1.reshape(1, H1)                           # b1 lives on the bias lane
    w1_full = jnp.concatenate([fused, w1_num, bias_row], axis=0)   # (k_real, 264)
    # Column H1 carries a constant 1.0 into h1 (from the bias lane) so that b2
    # can be folded into row H1 of w2.
    const_col = jnp.zeros((k_real, 1), jnp.float32).at[k_real - 1, 0].set(1.0)
    w1_full = jnp.concatenate([w1_full, const_col], axis=1)        # (k_real, 265)
    w1_full = jnp.pad(w1_full, ((0, feat_lanes - k_real),
                                (0, H1_PAD - (H1 + 1))))           # (feat_lanes, 384)

    w2_full = jnp.concatenate([w2, b2.reshape(1, H2)], axis=0)     # (265, 128)
    w2_full = jnp.pad(w2_full, ((0, H1_PAD - (H1 + 1)), (0, 0)))   # (384, 128)

    fused_params = dict(
        w1=w1_full.astype(jnp.bfloat16),                           # (feat_lanes, 384)
        w2=w2_full.astype(jnp.bfloat16),                           # (384, 128)
        w3=jnp.pad(w3, ((0, 0), (0, OUT_PAD - 1))).astype(jnp.bfloat16),  # (128, 128)
        b3=b3.reshape(1, 1).astype(jnp.float32),                   # (1, 1)
    )
    meta = dict(n_tok=n_tok, vocab=vocab, feat_lanes=feat_lanes)
    return fused_params, meta


# ---------------------------------------------------------------------------
# Forward: single pallas_call over a 1-D batch grid.
# ---------------------------------------------------------------------------
def net_forward(x, fused_params, *, meta, block_b=1024):
    B, S = x.shape
    n_tok = meta["n_tok"]
    assert S == n_tok + 3
    vocab = meta["vocab"]
    feat_lanes = meta["feat_lanes"]

    tb = min(block_b, _round_up(B, 8))        # batch tile (multiple of 8 sublanes)
    b_pad = _round_up(B, tb)
    if b_pad != B:
        x = jnp.pad(x, ((0, b_pad - B), (0, 0)))
    grid = (b_pad // tb,)

    w1 = fused_params["w1"]
    w2 = fused_params["w2"]
    w3 = fused_params["w3"]
    b3 = fused_params["b3"]

    kernel = functools.partial(_net_kernel, n_tok=n_tok, vocab=vocab,
                               feat_lanes=feat_lanes)

    flops = 2 * b_pad * (feat_lanes * H1_PAD + H1_PAD * H2 + H2 * OUT_PAD)
    bytes_accessed = (x.size * 4 + (w1.size + w2.size + w3.size) * 2
                      + b3.size * 4 + b_pad * 4)

    out = pl.pallas_call(
        kernel,
        out_shape=jax.ShapeDtypeStruct((b_pad, 1), jnp.float32),
        grid=grid,
        in_specs=[
            pl.BlockSpec((tb, S), lambda i: (i, 0)),        # batch tile of x
            pl.BlockSpec(w1.shape, lambda i: (0, 0)),       # weights stay VMEM-resident
            pl.BlockSpec(w2.shape, lambda i: (0, 0)),
            pl.BlockSpec(w3.shape, lambda i: (0, 0)),
            pl.BlockSpec(b3.shape, lambda i: (0, 0)),
        ],
        out_specs=pl.BlockSpec((tb, 1), lambda i: (i, 0)),  # 4 B/row writeback
        compiler_params=pltpu.CompilerParams(
            dimension_semantics=("parallel",),
            vmem_limit_bytes=32 * 1024 * 1024,
        ),
        cost_estimate=pl.CostEstimate(
            flops=flops, transcendentals=0, bytes_accessed=bytes_accessed),
    )(x, w1, w2, w3, b3)

    return out[:B]                             # (B, 1)


# ---------------------------------------------------------------------------
# Parameter init (PyTorch-style defaults) and pure-JAX reference for checking.
# Weights stored as (in_features, out_features).
# ---------------------------------------------------------------------------
def init_params(key, emb_dim, input_size, vocab_size):
    ks = jax.random.split(key, 7)

    def linear(kw, kb, fan_in, fan_out):
        bound = 1.0 / float(fan_in) ** 0.5
        w = jax.random.uniform(kw, (fan_in, fan_out), jnp.float32, -bound, bound)
        b = jax.random.uniform(kb, (fan_out,), jnp.float32, -bound, bound)
        return w, b

    p = {"embedding": jax.random.normal(ks[0], (vocab_size, emb_dim), jnp.float32)}
    p["w1"], p["b1"] = linear(ks[1], ks[2], input_size, H1)
    p["w2"], p["b2"] = linear(ks[3], ks[4], H1, H2)
    p["w3"], p["b3"] = linear(ks[5], ks[6], H2, 1)
    return p


def net_reference(x, params):
    tokens = x[:, :-3]
    numeric = x[:, -3:].astype(jnp.float32)
    x1 = jnp.take(params["embedding"], tokens, axis=0).reshape(x.shape[0], -1)
    feats = jnp.concatenate([x1, numeric], axis=1)
    h1 = jnp.maximum(feats @ params["w1"] + params["b1"], 0.0)
    h2 = jnp.maximum(h1 @ params["w2"] + params["b2"], 0.0)
    return h2 @ params["w3"] + params["b3"]


if __name__ == "__main__":
    # x: (B, S) int32 — first S-3 columns are token ids, last 3 are numeric features.
    B, S = 4, 8
    emb_dim, vocab_size = 8, 50
    n_tok = S - 3
    input_size = n_tok * emb_dim + 3      # 43 = fc1 in_features

    key = jax.random.PRNGKey(0)
    k_tok, k_num, k_param = jax.random.split(key, 3)
    tokens = jax.random.randint(k_tok, (B, n_tok), 0, vocab_size, dtype=jnp.int32)
    numeric = jax.random.randint(k_num, (B, 3), 0, 10, dtype=jnp.int32)
    x = jnp.concatenate([tokens, numeric], axis=1)

    params = init_params(k_param, emb_dim, input_size, vocab_size)
    fused_params, meta = prepare_params(params, n_tok=n_tok, vocab=vocab_size,
                                        emb_dim=emb_dim)

    fwd = jax.jit(functools.partial(net_forward, meta=meta))
    out = fwd(x, fused_params)
    jax.block_until_ready(out)

    assert out.shape == (B, 1)
    ref = net_reference(x, params)
    # bf16 matmul operands (f32 accumulation) -> ~2-3 significant digits.
    assert jnp.allclose(out, ref, rtol=5e-2, atol=5e-2), (out, ref)
    print("KERNEL_OK")
</pallas_src>

<mosaic_0001>
module attributes {stable_mosaic.version = 11 : i64} {
  func.func @_net_kernel(%arg0: i32, %arg1: memref<8x8xi32, #tpu.memory_space<vmem>>, %arg2: memref<256x384xbf16, #tpu.memory_space<vmem>>, %arg3: memref<384x128xbf16, #tpu.memory_space<vmem>>, %arg4: memref<128x128xbf16, #tpu.memory_space<vmem>>, %arg5: memref<1x1xf32, #tpu.memory_space<vmem>>, %arg6: memref<8x1xf32, #tpu.memory_space<vmem>>) attributes {dimension_semantics = [#tpu.dimension_semantics<parallel>], iteration_bounds = array<i64: 1>, scalar_prefetch = 0 : i64, scratch_operands = 0 : i64, tpu.core_type = #tpu.core_type<tc>, window_params = [{transform_indices = @transform_0, window_bounds = array<i64: 8, 8>}, {pipeline_mode = #tpu.pipeline_mode<synchronous>, transform_indices = @transform_1, window_bounds = array<i64: 256, 384>}, {pipeline_mode = #tpu.pipeline_mode<synchronous>, transform_indices = @transform_2, window_bounds = array<i64: 384, 128>}, {pipeline_mode = #tpu.pipeline_mode<synchronous>, transform_indices = @transform_3, window_bounds = array<i64: 128, 128>}, {pipeline_mode = #tpu.pipeline_mode<synchronous>, transform_indices = @transform_4, window_bounds = array<i64: 1, 1>}, {transform_indices = @transform_5, window_bounds = array<i64: 8, 1>}]} {
    %c0 = arith.constant 0 : index
    %c0_0 = arith.constant 0 : index
    %0 = vector.load %arg1[%c0, %c0_0] : memref<8x8xi32, #tpu.memory_space<vmem>>, vector<8x8xi32>
    %1 = tpu.iota {dimensions = array<i32: 1>} : vector<8x50xi32>
    %2 = vector.extract_strided_slice %0 {offsets = [0, 0], sizes = [8, 1], strides = [1, 1]} : vector<8x8xi32> to vector<8x1xi32>
    %3 = vector.broadcast %2 : vector<8x1xi32> to vector<8x50xi32>
    %4 = arith.cmpi eq, %1, %3 : vector<8x50xi32>
    %5 = arith.extui %4 : vector<8x50xi1> to vector<8x50xi32>
    %6 = arith.sitofp %5 : vector<8x50xi32> to vector<8x50xf32>
    %7 = arith.truncf %6 : vector<8x50xf32> to vector<8x50xbf16>
    %8 = vector.extract_strided_slice %0 {offsets = [0, 1], sizes = [8, 1], strides = [1, 1]} : vector<8x8xi32> to vector<8x1xi32>
    %9 = vector.broadcast %8 : vector<8x1xi32> to vector<8x50xi32>
    %10 = arith.cmpi eq, %1, %9 : vector<8x50xi32>
    %11 = arith.extui %10 : vector<8x50xi1> to vector<8x50xi32>
    %12 = arith.sitofp %11 : vector<8x50xi32> to vector<8x50xf32>
    %13 = arith.truncf %12 : vector<8x50xf32> to vector<8x50xbf16>
    %14 = vector.extract_strided_slice %0 {offsets = [0, 2], sizes = [8, 1], strides = [1, 1]} : vector<8x8xi32> to vector<8x1xi32>
    %15 = vector.broadcast %14 : vector<8x1xi32> to vector<8x50xi32>
    %16 = arith.cmpi eq, %1, %15 : vector<8x50xi32>
    %17 = arith.extui %16 : vector<8x50xi1> to vector<8x50xi32>
    %18 = arith.sitofp %17 : vector<8x50xi32> to vector<8x50xf32>
    %19 = arith.truncf %18 : vector<8x50xf32> to vector<8x50xbf16>
    %20 = vector.extract_strided_slice %0 {offsets = [0, 3], sizes = [8, 1], strides = [1, 1]} : vector<8x8xi32> to vector<8x1xi32>
    %21 = vector.broadcast %20 : vector<8x1xi32> to vector<8x50xi32>
    %22 = arith.cmpi eq, %1, %21 : vector<8x50xi32>
    %23 = arith.extui %22 : vector<8x50xi1> to vector<8x50xi32>
    %24 = arith.sitofp %23 : vector<8x50xi32> to vector<8x50xf32>
    %25 = arith.truncf %24 : vector<8x50xf32> to vector<8x50xbf16>
    %26 = vector.extract_strided_slice %0 {offsets = [0, 4], sizes = [8, 1], strides = [1, 1]} : vector<8x8xi32> to vector<8x1xi32>
    %27 = vector.broadcast %26 : vector<8x1xi32> to vector<8x50xi32>
    %28 = arith.cmpi eq, %1, %27 : vector<8x50xi32>
    %29 = arith.extui %28 : vector<8x50xi1> to vector<8x50xi32>
    %30 = arith.sitofp %29 : vector<8x50xi32> to vector<8x50xf32>
    %31 = arith.truncf %30 : vector<8x50xf32> to vector<8x50xbf16>
    %32 = vector.extract_strided_slice %0 {offsets = [0, 5], sizes = [8, 3], strides = [1, 1]} : vector<8x8xi32> to vector<8x3xi32>
    %33 = arith.sitofp %32 : vector<8x3xi32> to vector<8x3xbf16>
    %cst = arith.constant 1.000000e+00 : bf16
    %34 = vector.broadcast %cst : bf16 to vector<8x1xbf16>
    %cst_1 = arith.constant 0.000000e+00 : bf16
    %35 = vector.broadcast %cst_1 : bf16 to vector<8x2xbf16>
    %36 = tpu.concatenate %7, %13, %19, %25, %31, %33, %34, %35 in 1 : vector<8x50xbf16>, vector<8x50xbf16>, vector<8x50xbf16>, vector<8x50xbf16>, vector<8x50xbf16>, vector<8x3xbf16>, vector<8x1xbf16>, vector<8x2xbf16> -> vector<8x256xbf16>
    %c0_2 = arith.constant 0 : index
    %c0_3 = arith.constant 0 : index
    %37 = vector.load %arg2[%c0_2, %c0_3] : memref<256x384xbf16, #tpu.memory_space<vmem>>, vector<256x384xbf16>
    %cst_4 = arith.constant dense<0.000000e+00> : vector<8x384xf32>
    %38 = tpu.matmul %36, %37, %cst_4 {dimension_numbers = #tpu.dot_dimension_numbers<[1], [0], [0], [1], [0, 0, 1, 1], [], []>} : vector<8x256xbf16>, vector<256x384xbf16>, vector<8x384xf32> -> vector<8x384xf32>
    %cst_5 = arith.constant 0.000000e+00 : f32
    %39 = vector.broadcast %cst_5 : f32 to vector<8x384xf32>
    %40 = arith.maximumf %38, %39 : vector<8x384xf32>
    %41 = arith.truncf %40 : vector<8x384xf32> to vector<8x384xbf16>
    %c0_6 = arith.constant 0 : index
    %c0_7 = arith.constant 0 : index
    %42 = vector.load %arg3[%c0_6, %c0_7] : memref<384x128xbf16, #tpu.memory_space<vmem>>, vector<384x128xbf16>
    %cst_8 = arith.constant dense<0.000000e+00> : vector<8x128xf32>
    %43 = tpu.matmul %41, %42, %cst_8 {dimension_numbers = #tpu.dot_dimension_numbers<[1], [0], [0], [1], [0, 0, 1, 1], [], []>} : vector<8x384xbf16>, vector<384x128xbf16>, vector<8x128xf32> -> vector<8x128xf32>
    %cst_9 = arith.constant 0.000000e+00 : f32
    %44 = vector.broadcast %cst_9 : f32 to vector<8x128xf32>
    %45 = arith.maximumf %43, %44 : vector<8x128xf32>
    %46 = arith.truncf %45 : vector<8x128xf32> to vector<8x128xbf16>
    %c0_10 = arith.constant 0 : index
    %c0_11 = arith.constant 0 : index
    %47 = vector.load %arg4[%c0_10, %c0_11] : memref<128x128xbf16, #tpu.memory_space<vmem>>, vector<128x128xbf16>
    %cst_12 = arith.constant dense<0.000000e+00> : vector<8x128xf32>
    %48 = tpu.matmul %46, %47, %cst_12 {dimension_numbers = #tpu.dot_dimension_numbers<[1], [0], [0], [1], [0, 0, 1, 1], [], []>} : vector<8x128xbf16>, vector<128x128xbf16>, vector<8x128xf32> -> vector<8x128xf32>
    %49 = vector.extract_strided_slice %48 {offsets = [0, 0], sizes = [8, 1], strides = [1, 1]} : vector<8x128xf32> to vector<8x1xf32>
    %c0_13 = arith.constant 0 : index
    %c0_14 = arith.constant 0 : index
    %50 = vector.load %arg5[%c0_13, %c0_14] : memref<1x1xf32, #tpu.memory_space<vmem>>, vector<1x1xf32>
    %51 = vector.broadcast %50 : vector<1x1xf32> to vector<8x1xf32>
    %52 = arith.addf %49, %51 : vector<8x1xf32>
    %c0_15 = arith.constant 0 : index
    %c0_16 = arith.constant 0 : index
    %53 = vector.load %arg6[%c0_15, %c0_16] : memref<8x1xf32, #tpu.memory_space<vmem>>, vector<8x1xf32>
    tpu.vector_store %arg6[%c0_15, %c0_16], %52 {strides = array<i32>} : memref<8x1xf32, #tpu.memory_space<vmem>>, vector<8x1xf32>,
    return
  }
  func.func @transform_0(%arg0: i32) -> (i32, i32) {
    %c0_i32 = arith.constant 0 : i32
    %c0_i32_0 = arith.constant 0 : i32
    return %arg0, %c0_i32 : i32, i32
  }
  func.func @transform_1(%arg0: i32) -> (i32, i32) {
    %c0_i32 = arith.constant 0 : i32
    %c0_i32_0 = arith.constant 0 : i32
    %c0_i32_1 = arith.constant 0 : i32
    return %c0_i32, %c0_i32_0 : i32, i32
  }
  func.func @transform_2(%arg0: i32) -> (i32, i32) {
    %c0_i32 = arith.constant 0 : i32
    %c0_i32_0 = arith.constant 0 : i32
    %c0_i32_1 = arith.constant 0 : i32
    return %c0_i32, %c0_i32_0 : i32, i32
  }
  func.func @transform_3(%arg0: i32) -> (i32, i32) {
    %c0_i32 = arith.constant 0 : i32
    %c0_i32_0 = arith.constant 0 : i32
    %c0_i32_1 = arith.constant 0 : i32
    return %c0_i32, %c0_i32_0 : i32, i32
  }
  func.func @transform_4(%arg0: i32) -> (i32, i32) {
    %c0_i32 = arith.constant 0 : i32
    %c0_i32_0 = arith.constant 0 : i32
    %c0_i32_1 = arith.constant 0 : i32
    return %c0_i32, %c0_i32_0 : i32, i32
  }
  func.func @transform_5(%arg0: i32) -> (i32, i32) {
    %c0_i32 = arith.constant 0 : i32
    %c0_i32_0 = arith.constant 0 : i32
    return %arg0, %c0_i32 : i32, i32
  }
}

</mosaic_0001>

<llo_original>
// kernel: net_forward.1
$region0: #{net_forward.1}
  #allocation0 [shape = 'u32[]', space=smem, size = 0x4, offset = 0x4, fixed_abs, tag = 'smem constant byte address 0x4 - core index']
  #allocation1 [shape = 'u32[144,128]{1,0:T(1,128)}', space=vmem, size = 0x12000, scoped, tag = 'internal scratch']
  #allocation2 [shape = 'f32[1,1]{1,0:T(1,128)S(1)}', space=vmem, size = 0x200, scoped, tag = 'scoped memory for net_forward.1']
  %s0 = inlined_call_operand.vmem [shape: s32[8,8], index: 0, kind: input, shape index: {}]
  %s1 = inlined_call_operand.hbm [shape: bf16[256,384], index: 1, kind: input, shape index: {}]
  %s2 = inlined_call_operand.hbm [shape: bf16[384,128], index: 2, kind: input, shape index: {}]
  %s3 = inlined_call_operand.hbm [shape: bf16[128,128], index: 3, kind: input, shape index: {}]
  %s4 = inlined_call_operand.<no memory space> [shape: f32[1,1], index: 4, kind: input, shape index: {}]
  %s5 = inlined_call_operand.vmem [shape: f32[8,1], index: 5, kind: output, shape index: {}]
  %s6 = sld [smem:[#allocation0]]
  $region42: #{net_forward.1} parent=0
    _
  %s8 = ssub.s32 1, %s6
  %s9 = scalar_select 0, %s8, %s6
  %v10 = vstv %s4
  %11 = vst [vmem:[#allocation2] sm:$0x1] %v10
  $region1: #{net_forward.1} parent=0
    #allocation3 [shape = 'u8[196608]{0}', space=vmem, size = 0x30000, scoped, tag = 'input window, operand 1, single buffered']
    #allocation4 [shape = 's32[1]{0}', space=sflag, size = 0x4, scoped, tag = 'scoped memory for net_forward.1']
    #allocation5 [shape = 'u8[98304]{0}', space=vmem, size = 0x18000, scoped, tag = 'input window, operand 2, single buffered']
    #allocation6 [shape = 's32[1]{0}', space=sflag, size = 0x4, scoped, tag = 'scoped memory for net_forward.1']
    #allocation7 [shape = 'u8[32768]{0}', space=vmem, size = 0x8000, scoped, tag = 'input window, operand 3, single buffered']
    %12 = vsyncpa [#allocation4], 0
    %13 = vsyncpa [#allocation6], 0
    // Predicated region
    $region2: #{net_forward.1} parent=1 // pred_check
      _
    $region3: #{net_forward.1} parent=1 // pred_check_branch
      %15 = sbr.rel (0) target = $region5
    $region4: #{net_forward.1} parent=1 // pred_region
      _
    $region5: #{net_forward.1} parent=1 // pred_fallthru
      _
    // Predicated region
    $region6: #{net_forward.1} parent=1 // pred_check
      _
    $region7: #{net_forward.1} parent=1 // pred_check_branch
      %17 = sbr.rel (0) target = $region9
    $region8: #{net_forward.1} parent=1 // pred_region
      %s19 = ssub.s32 6144, 6144
      %20 = vsyncadd [#allocation4], %s19
      %s21 = sshll.u32 [#allocation3], 4
      %s22 = int_to_ptr.vmem [resolvable:$true] %s21
      %27 = dma.hbm_to_vmem [thread:$0]  %s1, 6144, %s22, [#allocation4], 192, 192, 12
    $region9: #{net_forward.1} parent=1 // pred_fallthru
      _
    // Predicated region
    $region10: #{net_forward.1} parent=1 // pred_check
      _
    $region11: #{net_forward.1} parent=1 // pred_check_branch
      %29 = sbr.rel (0) target = $region13
    $region12: #{net_forward.1} parent=1 // pred_region
      %s31 = ssub.s32 3072, 3072
      %32 = vsyncadd [#allocation6], %s31
      %s33 = sshll.u32 [#allocation5], 4
      %s34 = int_to_ptr.vmem [resolvable:$true] %s33
      %39 = dma.hbm_to_vmem [thread:$0]  %s2, 3072, %s34, [#allocation6], 64, 64, 4
    $region13: #{net_forward.1} parent=1 // pred_fallthru
      _
    // Predicated region
    $region14: #{net_forward.1} parent=1 // pred_check
      _
    $region15: #{net_forward.1} parent=1 // pred_check_branch
      %41 = sbr.rel (0) target = $region17
    $region16: #{net_forward.1} parent=1 // pred_region
      %s43 = ssub.s32 1024, 1024
      %44 = vsyncadd [#allocation6], %s43
      %s45 = sshll.u32 [#allocation7], 4
      %s46 = int_to_ptr.vmem [resolvable:$true] %s45
      %51 = dma.hbm_to_vmem [thread:$0]  %s3, 1024, %s46, [#allocation6], 64, 64, 4
    $region17: #{net_forward.1} parent=1 // pred_fallthru
      _
    // Predicated region
    $region18: #{net_forward.1} parent=1 // pred_check
      _
    $region19: #{net_forward.1} parent=1 // pred_check_branch
      %53 = sbr.rel (0) target = $region21
    $region20: #{net_forward.1} parent=1 // pred_region
      _
    $region21: #{net_forward.1} parent=1 // pred_fallthru
      _
    // Predicated region
    $region22: #{net_forward.1} parent=1 // pred_check
      _
    $region23: #{net_forward.1} parent=1 // pred_check_branch
      %55 = sbr.rel (0) target = $region25
    $region24: #{net_forward.1} parent=1 // pred_region
      %56 = dma.done [#allocation4], 6144
    $region25: #{net_forward.1} parent=1 // pred_fallthru
      _
    // Predicated region
    $region26: #{net_forward.1} parent=1 // pred_check
      _
    $region27: #{net_forward.1} parent=1 // pred_check_branch
      %58 = sbr.rel (0) target = $region29
    $region28: #{net_forward.1} parent=1 // pred_region
      %59 = dma.done [#allocation6], 3072
    $region29: #{net_forward.1} parent=1 // pred_fallthru
      _
    // Predicated region
    $region30: #{net_forward.1} parent=1 // pred_check
      _
    $region31: #{net_forward.1} parent=1 // pred_check_branch
      %61 = sbr.rel (0) target = $region33
    $region32: #{net_forward.1} parent=1 // pred_region
      %62 = dma.done [#allocation6], 1024
    $region33: #{net_forward.1} parent=1 // pred_fallthru
      _
    %v65 = vld [vmem:[%s0] sm:$0xff]
    %v66 = vlaneseq
    %v67 = vand.u32 %v66, 127
    %68 = vset.pattern.permute.xlu0 0
    %69 = vperm.xlu0 %68, %v65
    %v70 = vpop.permute.xlu0 %69
    %vm71 = vcmp.eq.s32.totalorder %v67, %v70
    %v72 = vsel %vm71, 1, 0
    %v73 = vcvt.s32.f32 %v72
    %v74 = vpack.c.bf16 %v73, %v73
    %75 = vset.pattern.permute.xlu0 1
    %76 = vperm.xlu0 %75, %v65
    %v77 = vpop.permute.xlu0 %76
    %vm78 = vcmp.eq.s32.totalorder %v67, %v77
    %v79 = vsel %vm78, 1, 0
    %v80 = vcvt.s32.f32 %v79
    %v81 = vpack.c.bf16 %v80, %v80
    %82 = vset.pattern.permute.xlu0 2
    %83 = vperm.xlu0 %82, %v65
    %v84 = vpop.permute.xlu0 %83
    %vm85 = vcmp.eq.s32.totalorder %v67, %v84
    %v86 = vsel %vm85, 1, 0
    %v87 = vcvt.s32.f32 %v86
    %v88 = vpack.c.bf16 %v87, %v87
    %89 = vset.pattern.permute.xlu0 3
    %90 = vperm.xlu0 %89, %v65
    %v91 = vpop.permute.xlu0 %90
    %vm92 = vcmp.eq.s32.totalorder %v67, %v91
    %v93 = vsel %vm92, 1, 0
    %v94 = vcvt.s32.f32 %v93
    %v95 = vpack.c.bf16 %v94, %v94
    %96 = vset.pattern.permute.xlu0 4
    %97 = vperm.xlu0 %96, %v65
    %v98 = vpop.permute.xlu0 %97
    %vm99 = vcmp.eq.s32.totalorder %v67, %v98
    %v100 = vsel %vm99, 1, 0
    %v101 = vcvt.s32.f32 %v100
    %v102 = vpack.c.bf16 %v101, %v101
    %v103 = vcvt.s32.f32 %v65
    %v104 = vpack.c.bf16 %v103, %v103
    %106 = vrot.lane.b32.xlu0 %v81, 50
    %v107 = vpop.permute.xlu0 %106
    %109 = vrot.lane.b32.xlu0 %v88, 100
    %v110 = vpop.permute.xlu0 %109
    %112 = vrot.lane.b32.xlu0 %v95, 22
    %v113 = vpop.permute.xlu0 %112
    %115 = vrot.lane.b32.xlu0 %v102, 72
    %v116 = vpop.permute.xlu0 %115
    %118 = vrot.lane.b32.xlu0 %v104, 117
    %v119 = vpop.permute.xlu0 %118
    %vm120 = vcmask 408576
    %v123 = vsel %vm120, %v74, %v107
    %vm124 = vcmask 818176
    %v126 = vsel %vm124, %v123, %v110
    %vm128 = vcmask 179200
    %v130 = vsel %vm128, %v110, %v113
    %vm131 = vcmask 588800
    %v133 = vsel %vm131, %v130, %v116
    %vm134 = vcmask 998400
    %v136 = vsel %vm134, %v133, %v119
    %vm137 = vcmask 1022976
    %v139 = vsel %vm137, %v136, 1065369472
    %vm140 = vcmask 1031168
    %v142 = vsel %vm140, %v139, 0
    %v144 = vld [vmem:[#allocation3] sm:$0xff]
    %v145 = vld [vmem:[#allocation3 + $0x8] sm:$0xf]
    %v146 = vld [vmem:[#allocation3 + $0xc] sm:$0xff]
    %v147 = vld [vmem:[#allocation3 + $0x14] sm:$0xf]
    %v148 = vld [vmem:[#allocation3 + $0x18] sm:$0xff]
    %v149 = vld [vmem:[#allocation3 + $0x20] sm:$0xf]
    %v150 = vld [vmem:[#allocation3 + $0x24] sm:$0xff]
    %v151 = vld [vmem:[#allocation3 + $0x2c] sm:$0xf]
    %v152 = vld [vmem:[#allocation3 + $0x30] sm:$0xff]
    %v153 = vld [vmem:[#allocation3 + $0x38] sm:$0xf]
    %v154 = vld [vmem:[#allocation3 + $0x3c] sm:$0xff]
    %v155 = vld [vmem:[#allocation3 + $0x44] sm:$0xf]
    %v156 = vld [vmem:[#allocation3 + $0x48] sm:$0xff]
    %v157 = vld [vmem:[#allocation3 + $0x50] sm:$0xf]
    %v158 = vld [vmem:[#allocation3 + $0x54] sm:$0xff]
    %v159 = vld [vmem:[#allocation3 + $0x5c] sm:$0xf]
    %v160 = vld [vmem:[#allocation3 + $0x60] sm:$0xff]
    %v161 = vld [vmem:[#allocation3 + $0x68] sm:$0xf]
    %v162 = vld [vmem:[#allocation3 + $0x6c] sm:$0xff]
    %v163 = vld [vmem:[#allocation3 + $0x74] sm:$0xf]
    %v164 = vld [vmem:[#allocation3 + $0x78] sm:$0xff]
    %v165 = vld [vmem:[#allocation3 + $0x80] sm:$0xf]
    %v166 = vld [vmem:[#allocation3 + $0x84] sm:$0xff]
    %v167 = vld [vmem:[#allocation3 + $0x8c] sm:$0xf]
    %v168 = vld [vmem:[#allocation3 + $0x90] sm:$0xff]
    %v169 = vld [vmem:[#allocation3 + $0x98] sm:$0xf]
    %v170 = vld [vmem:[#allocation3 + $0x9c] sm:$0xff]
    %v171 = vld [vmem:[#allocation3 + $0xa4] sm:$0xf]
    %v172 = vld [vmem:[#allocation3 + $0xa8] sm:$0xff]
    %v173 = vld [vmem:[#allocation3 + $0xb0] sm:$0xf]
    %v174 = vld [vmem:[#allocation3 + $0xb4] sm:$0xff]
    %v175 = vld [vmem:[#allocation3 + $0xbc] sm:$0xf]
    %v176 = vld [vmem:[#allocation3 + $0xc0] sm:$0xff]
    %v177 = vld [vmem:[#allocation3 + $0xc8] sm:$0xf]
    %v178 = vld [vmem:[#allocation3 + $0xcc] sm:$0xff]
    %v179 = vld [vmem:[#allocation3 + $0xd4] sm:$0xf]
    %v180 = vld [vmem:[#allocation3 + $0xd8] sm:$0xff]
    %v181 = vld [vmem:[#allocation3 + $0xe0] sm:$0xf]
    %v182 = vld [vmem:[#allocation3 + $0xe4] sm:$0xff]
    %v183 = vld [vmem:[#allocation3 + $0xec] sm:$0xf]
    %v184 = vld [vmem:[#allocation3 + $0xf0] sm:$0xff]
    %v185 = vld [vmem:[#allocation3 + $0xf8] sm:$0xf]
    %v186 = vld [vmem:[#allocation3 + $0xfc] sm:$0xff]
    %v187 = vld [vmem:[#allocation3 + $0x104] sm:$0xf]
    %v188 = vld [vmem:[#allocation3 + $0x108] sm:$0xff]
    %v189 = vld [vmem:[#allocation3 + $0x110] sm:$0xf]
    %v190 = vld [vmem:[#allocation3 + $0x114] sm:$0xff]
    %v191 = vld [vmem:[#allocation3 + $0x11c] sm:$0xf]
    %v192 = vld [vmem:[#allocation3 + $0x120] sm:$0xff]
    %v193 = vld [vmem:[#allocation3 + $0x128] sm:$0xf]
    %v194 = vld [vmem:[#allocation3 + $0x12c] sm:$0xff]
    %v195 = vld [vmem:[#allocation3 + $0x134] sm:$0xf]
    %v196 = vld [vmem:[#allocation3 + $0x138] sm:$0xff]
    %v197 = vld [vmem:[#allocation3 + $0x140] sm:$0xf]
    %v198 = vld [vmem:[#allocation3 + $0x144] sm:$0xff]
    %v199 = vld [vmem:[#allocation3 + $0x14c] sm:$0xf]
    %v200 = vld [vmem:[#allocation3 + $0x150] sm:$0xff]
    %v201 = vld [vmem:[#allocation3 + $0x158] sm:$0xf]
    %v202 = vld [vmem:[#allocation3 + $0x15c] sm:$0xff]
    %v203 = vld [vmem:[#allocation3 + $0x164] sm:$0xf]
    %v204 = vld [vmem:[#allocation3 + $0x168] sm:$0xff]
    %v205 = vld [vmem:[#allocation3 + $0x170] sm:$0xf]
    %v206 = vld [vmem:[#allocation3 + $0x174] sm:$0xff]
    %v207 = vld [vmem:[#allocation3 + $0x17c] sm:$0xf]
    %v272 = vunpack.c.l.b16 %v144
    %v273 = vunpack.c.h.b16 %v144
    %v274 = vunpack.c.l.b16 %v145
    %v275 = vunpack.c.l.b16 %v146
    %v276 = vunpack.c.h.b16 %v146
    %v277 = vunpack.c.l.b16 %v147
    %v278 = vunpack.c.l.b16 %v148
    %v279 = vunpack.c.h.b16 %v148
    %v280 = vunpack.c.l.b16 %v149
    %v281 = vunpack.c.l.b16 %v150
    %v282 = vunpack.c.h.b16 %v150
    %v283 = vunpack.c.l.b16 %v151
    %v284 = vunpack.c.l.b16 %v152
    %v285 = vunpack.c.h.b16 %v152
    %v286 = vunpack.c.l.b16 %v153
    %v287 = vunpack.c.l.b16 %v154
    %v288 = vunpack.c.h.b16 %v154
    %v289 = vunpack.c.l.b16 %v155
    %v290 = vunpack.c.l.b16 %v156
    %v291 = vunpack.c.h.b16 %v156
    %v292 = vunpack.c.l.b16 %v157
    %v293 = vunpack.c.l.b16 %v158
    %v294 = vunpack.c.h.b16 %v158
    %v295 = vunpack.c.l.b16 %v159
    %v296 = vunpack.c.l.b16 %v160
    %v297 = vunpack.c.h.b16 %v160
    %v298 = vunpack.c.l.b16 %v161
    %v299 = vunpack.c.l.b16 %v162
    %v300 = vunpack.c.h.b16 %v162
    %v301 = vunpack.c.l.b16 %v163
    %v302 = vunpack.c.l.b16 %v164
    %v303 = vunpack.c.h.b16 %v164
    %v304 = vunpack.c.l.b16 %v165
    %v305 = vunpack.c.l.b16 %v166
    %v306 = vunpack.c.h.b16 %v166
    %v307 = vunpack.c.l.b16 %v167
    %v308 = vunpack.c.l.b16 %v168
    %v309 = vunpack.c.h.b16 %v168
    %v310 = vunpack.c.l.b16 %v169
    %v311 = vunpack.c.l.b16 %v170
    %v312 = vunpack.c.h.b16 %v170
    %v313 = vunpack.c.l.b16 %v171
    %v314 = vunpack.c.l.b16 %v172
    %v315 = vunpack.c.h.b16 %v172
    %v316 = vunpack.c.l.b16 %v173
    %v317 = vunpack.c.l.b16 %v174
    %v318 = vunpack.c.h.b16 %v174
    %v319 = vunpack.c.l.b16 %v175
    %v320 = vunpack.c.l.b16 %v176
    %v321 = vunpack.c.h.b16 %v176
    %v322 = vunpack.c.l.b16 %v177
    %v323 = vunpack.c.l.b16 %v178
    %v324 = vunpack.c.h.b16 %v178
    %v325 = vunpack.c.l.b16 %v179
    %v326 = vunpack.c.l.b16 %v180
    %v327 = vunpack.c.h.b16 %v180
    %v328 = vunpack.c.l.b16 %v181
    %v329 = vunpack.c.l.b16 %v182
    %v330 = vunpack.c.h.b16 %v182
    %v331 = vunpack.c.l.b16 %v183
    %v332 = vunpack.c.l.b16 %v184
    %v333 = vunpack.c.h.b16 %v184
    %v334 = vunpack.c.l.b16 %v185
    %v335 = vunpack.c.l.b16 %v186
    %v336 = vunpack.c.h.b16 %v186
    %v337 = vunpack.c.l.b16 %v187
    %v338 = vunpack.c.l.b16 %v188
    %v339 = vunpack.c.h.b16 %v188
    %v340 = vunpack.c.l.b16 %v189
    %v341 = vunpack.c.l.b16 %v190
    %v342 = vunpack.c.h.b16 %v190
    %v343 = vunpack.c.l.b16 %v191
    %v344 = vunpack.c.l.b16 %v192
    %v345 = vunpack.c.h.b16 %v192
    %v346 = vunpack.c.l.b16 %v193
    %v347 = vunpack.c.l.b16 %v194
    %v348 = vunpack.c.h.b16 %v194
    %v349 = vunpack.c.l.b16 %v195
    %v350 = vunpack.c.l.b16 %v196
    %v351 = vunpack.c.h.b16 %v196
    %v352 = vunpack.c.l.b16 %v197
    %v353 = vunpack.c.l.b16 %v198
    %v354 = vunpack.c.h.b16 %v198
    %v355 = vunpack.c.l.b16 %v199
    %v356 = vunpack.c.l.b16 %v200
    %v357 = vunpack.c.h.b16 %v200
    %v358 = vunpack.c.l.b16 %v201
    %v359 = vunpack.c.l.b16 %v202
    %v360 = vunpack.c.h.b16 %v202
    %v361 = vunpack.c.l.b16 %v203
    %v362 = vunpack.c.l.b16 %v204
    %v363 = vunpack.c.h.b16 %v204
    %v364 = vunpack.c.l.b16 %v205
    %v365 = vunpack.c.l.b16 %v206
    %v366 = vunpack.c.h.b16 %v206
    %v367 = vunpack.c.l.b16 %v207
    %v368 = vpack.c.b16 %v275, %v272
    %v369 = vpack.c.b16 %v276, %v273
    %v370 = vpack.c.b16 %v277, %v274
    %v371 = vpack.c.b16 %v281, %v278
    %v372 = vpack.c.b16 %v282, %v279
    %v373 = vpack.c.b16 %v283, %v280
    %v374 = vpack.c.b16 %v287, %v284
    %v375 = vpack.c.b16 %v288, %v285
    %v376 = vpack.c.b16 %v289, %v286
    %v377 = vpack.c.b16 %v293, %v290
    %v378 = vpack.c.b16 %v294, %v291
    %v379 = vpack.c.b16 %v295, %v292
    %v380 = vpack.c.b16 %v299, %v296
    %v381 = vpack.c.b16 %v300, %v297
    %v382 = vpack.c.b16 %v301, %v298
    %v383 = vpack.c.b16 %v305, %v302
    %v384 = vpack.c.b16 %v306, %v303
    %v385 = vpack.c.b16 %v307, %v304
    %v386 = vpack.c.b16 %v311, %v308
    %v387 = vpack.c.b16 %v312, %v309
    %v388 = vpack.c.b16 %v313, %v310
    %v389 = vpack.c.b16 %v317, %v314
    %v390 = vpack.c.b16 %v318, %v315
    %v391 = vpack.c.b16 %v319, %v316
    %v392 = vpack.c.b16 %v323, %v320
    %v393 = vpack.c.b16 %v324, %v321
    %v394 = vpack.c.b16 %v325, %v322
    %v395 = vpack.c.b16 %v329, %v326
    %v396 = vpack.c.b16 %v330, %v327
    %v397 = vpack.c.b16 %v331, %v328
    %v398 = vpack.c.b16 %v335, %v332
    %v399 = vpack.c.b16 %v336, %v333
    %v400 = vpack.c.b16 %v337, %v334
    %v401 = vpack.c.b16 %v341, %v338
    %v402 = vpack.c.b16 %v342, %v339
    %v403 = vpack.c.b16 %v343, %v340
    %v404 = vpack.c.b16 %v347, %v344
    %v405 = vpack.c.b16 %v348, %v345
    %v406 = vpack.c.b16 %v349, %v346
    %v407 = vpack.c.b16 %v353, %v350
    %v408 = vpack.c.b16 %v354, %v351
    %v409 = vpack.c.b16 %v355, %v352
    %v410 = vpack.c.b16 %v359, %v356
    %v411 = vpack.c.b16 %v360, %v357
    %v412 = vpack.c.b16 %v361, %v358
    %v413 = vpack.c.b16 %v365, %v362
    %v414 = vpack.c.b16 %v366, %v363
    %v415 = vpack.c.b16 %v367, %v364
    %464 = vmatprep.subr.bf16.mxu0 %v369
    %465 = vmatpush1.bf16.msra.mxu0 %v368
    %466 = vmatprep.subr.bf16.mxu0 %v372
    %467 = vmatpush1.bf16.msra.mxu0 %v371
    %468 = vmatprep.subr.bf16.mxu0 %v375
    %469 = vmatpush1.bf16.msra.mxu0 %v374
    %470 = vmatprep.subr.bf16.mxu0 %v378
    %471 = vmatpush1.bf16.msra.mxu0 %v377
    %472 = vmatprep.subr.bf16.mxu0 %v381
    %473 = vmatpush1.bf16.msra.mxu0 %v380
    %474 = vmatprep.subr.bf16.mxu0 %v384
    %475 = vmatpush1.bf16.msra.mxu0 %v383
    %476 = vmatprep.subr.bf16.mxu0 %v387
    %477 = vmatpush1.bf16.msra.mxu0 %v386
    %478 = vmatprep.subr.bf16.mxu0 %v390
    %479 = vmatpush1.bf16.msra.mxu0 %v389
    %480 = vmatprep.subr.bf16.mxu0 %v393
    %481 = vmatpush1.bf16.msra.mxu0 %v392
    %482 = vmatprep.subr.bf16.mxu0 %v396
    %483 = vmatpush1.bf16.msra.mxu0 %v395
    %484 = vmatprep.subr.bf16.mxu0 %v399
    %485 = vmatpush1.bf16.msra.mxu0 %v398
    %486 = vmatprep.subr.bf16.mxu0 %v402
    %487 = vmatpush1.bf16.msra.mxu0 %v401
    %488 = vmatprep.subr.bf16.mxu0 %v405
    %489 = vmatpush1.bf16.msra.mxu0 %v404
    %490 = vmatprep.subr.bf16.mxu0 %v408
    %491 = vmatpush1.bf16.msra.mxu0 %v407
    %492 = vmatprep.subr.bf16.mxu0 %v411
    %493 = vmatpush1.bf16.msra.mxu0 %v410
    %494 = vmatprep.subr.bf16.mxu0 %v414
    %495 = vmatpush1.bf16.msra.mxu0 %v413
    %496 = vmatprep.mubr.bf16.mxu0 %v142
    %497 = vmatmul.mubr.bf16.gmra.mrb[0].mxu0 %v126
    %v498 = vpop.f32.mrb[0].mxu0
    %v499 = vadd.f32 0.0, %v498
    %v500 = vpop.f32.mrb[0].mxu0
    %v501 = vadd.f32 0.0, %v500
    %v502 = vpop.f32.mrb[0].mxu0
    %v503 = vpop.f32.mrb[0].mxu0
    %504 = vdwg.mxu0
    %505 = vmatprep.subr.bf16.mxu0 0
    %506 = vmatpush1.bf16.msra.mxu0 %v370
    %507 = vmatprep.subr.bf16.mxu0 0
    %508 = vmatpush1.bf16.msra.mxu0 %v373
    %509 = vmatprep.subr.bf16.mxu0 0
    %510 = vmatpush1.bf16.msra.mxu0 %v376
    %511 = vmatprep.subr.bf16.mxu0 0
    %512 = vmatpush1.bf16.msra.mxu0 %v379
    %513 = vmatprep.subr.bf16.mxu0 0
    %514 = vmatpush1.bf16.msra.mxu0 %v382
    %515 = vmatprep.subr.bf16.mxu0 0
    %516 = vmatpush1.bf16.msra.mxu0 %v385
    %517 = vmatprep.subr.bf16.mxu0 0
    %518 = vmatpush1.bf16.msra.mxu0 %v388
    %519 = vmatprep.subr.bf16.mxu0 0
    %520 = vmatpush1.bf16.msra.mxu0 %v391
    %521 = vmatprep.subr.bf16.mxu0 0
    %522 = vmatpush1.bf16.msra.mxu0 %v394
    %523 = vmatprep.subr.bf16.mxu0 0
    %524 = vmatpush1.bf16.msra.mxu0 %v397
    %525 = vmatprep.subr.bf16.mxu0 0
    %526 = vmatpush1.bf16.msra.mxu0 %v400
    %527 = vmatprep.subr.bf16.mxu0 0
    %528 = vmatpush1.bf16.msra.mxu0 %v403
    %529 = vmatprep.subr.bf16.mxu0 0
    %530 = vmatpush1.bf16.msra.mxu0 %v406
    %531 = vmatprep.subr.bf16.mxu0 0
    %532 = vmatpush1.bf16.msra.mxu0 %v409
    %533 = vmatprep.subr.bf16.mxu0 0
    %534 = vmatpush1.bf16.msra.mxu0 %v412
    %535 = vmatprep.subr.bf16.mxu0 0
    %536 = vmatpush1.bf16.msra.mxu0 %v415
    %537 = vmatprep.mubr.bf16.mxu0 %v142
    %538 = vmatmul.mubr.bf16.gmra.mrb[0].mxu0 %v126
    %v539 = vpop.f32.mrb[0].mxu0
    %v540 = vadd.f32 0.0, %v539
    %v541 = vpop.f32.mrb[0].mxu0
    %v542 = vpop.f32.mrb[0].mxu0
    %v543 = vpop.f32.mrb[0].mxu0
    %544 = vdwg.mxu0
    %v545 = vmax.f32 %v499, 0.0
    %v546 = vmax.f32 %v501, 0.0
    %v547 = vmax.f32 %v540, 0.0
    %v548 = vpack.c.bf16 %v545, %v545
    %v549 = vpack.c.bf16 %v546, %v546
    %v550 = vpack.c.bf16 %v547, %v547
    %v551 = vld [vmem:[#allocation5] sm:$0xf]
    %v552 = vld [vmem:[#allocation5 + $0x4] sm:$0xf]
    %v553 = vld [vmem:[#allocation5 + $0x8] sm:$0xf]
    %v554 = vld [vmem:[#allocation5 + $0xc] sm:$0xf]
    %v555 = vld [vmem:[#allocation5 + $0x10] sm:$0xf]
    %v556 = vld [vmem:[#allocation5 + $0x14] sm:$0xf]
    %v557 = vld [vmem:[#allocation5 + $0x18] sm:$0xf]
    %v558 = vld [vmem:[#allocation5 + $0x1c] sm:$0xf]
    %v559 = vld [vmem:[#allocation5 + $0x20] sm:$0xf]
    %v560 = vld [vmem:[#allocation5 + $0x24] sm:$0xf]
    %v561 = vld [vmem:[#allocation5 + $0x28] sm:$0xf]
    %v562 = vld [vmem:[#allocation5 + $0x2c] sm:$0xf]
    %v563 = vld [vmem:[#allocation5 + $0x30] sm:$0xf]
    %v564 = vld [vmem:[#allocation5 + $0x34] sm:$0xf]
    %v565 = vld [vmem:[#allocation5 + $0x38] sm:$0xf]
    %v566 = vld [vmem:[#allocation5 + $0x3c] sm:$0xf]
    %v567 = vld [vmem:[#allocation5 + $0x40] sm:$0xf]
    %v568 = vld [vmem:[#allocation5 + $0x44] sm:$0xf]
    %v569 = vld [vmem:[#allocation5 + $0x48] sm:$0xf]
    %v570 = vld [vmem:[#allocation5 + $0x4c] sm:$0xf]
    %v571 = vld [vmem:[#allocation5 + $0x50] sm:$0xf]
    %v572 = vld [vmem:[#allocation5 + $0x54] sm:$0xf]
    %v573 = vld [vmem:[#allocation5 + $0x58] sm:$0xf]
    %v574 = vld [vmem:[#allocation5 + $0x5c] sm:$0xf]
    %v575 = vld [vmem:[#allocation5 + $0x60] sm:$0xf]
    %v576 = vld [vmem:[#allocation5 + $0x64] sm:$0xf]
    %v577 = vld [vmem:[#allocation5 + $0x68] sm:$0xf]
    %v578 = vld [vmem:[#allocation5 + $0x6c] sm:$0xf]
    %v579 = vld [vmem:[#allocation5 + $0x70] sm:$0xf]
    %v580 = vld [vmem:[#allocation5 + $0x74] sm:$0xf]
    %v581 = vld [vmem:[#allocation5 + $0x78] sm:$0xf]
    %v582 = vld [vmem:[#allocation5 + $0x7c] sm:$0xf]
    %v583 = vld [vmem:[#allocation5 + $0x80] sm:$0xf]
    %v584 = vld [vmem:[#allocation5 + $0x84] sm:$0xf]
    %v585 = vld [vmem:[#allocation5 + $0x88] sm:$0xf]
    %v586 = vld [vmem:[#allocation5 + $0x8c] sm:$0xf]
    %v587 = vld [vmem:[#allocation5 + $0x90] sm:$0xf]
    %v588 = vld [vmem:[#allocation5 + $0x94] sm:$0xf]
    %v589 = vld [vmem:[#allocation5 + $0x98] sm:$0xf]
    %v590 = vld [vmem:[#allocation5 + $0x9c] sm:$0xf]
    %v591 = vld [vmem:[#allocation5 + $0xa0] sm:$0xf]
    %v592 = vld [vmem:[#allocation5 + $0xa4] sm:$0xf]
    %v593 = vld [vmem:[#allocation5 + $0xa8] sm:$0xf]
    %v594 = vld [vmem:[#allocation5 + $0xac] sm:$0xf]
    %v595 = vld [vmem:[#allocation5 + $0xb0] sm:$0xf]
    %v596 = vld [vmem:[#allocation5 + $0xb4] sm:$0xf]
    %v597 = vld [vmem:[#allocation5 + $0xb8] sm:$0xf]
    %v598 = vld [vmem:[#allocation5 + $0xbc] sm:$0xf]
    %v647 = vunpack.c.l.b16 %v551
    %v648 = vunpack.c.l.b16 %v552
    %v649 = vunpack.c.l.b16 %v553
    %v650 = vunpack.c.l.b16 %v554
    %v651 = vunpack.c.l.b16 %v555
    %v652 = vunpack.c.l.b16 %v556
    %v653 = vunpack.c.l.b16 %v557
    %v654 = vunpack.c.l.b16 %v558
    %v655 = vunpack.c.l.b16 %v559
    %v656 = vunpack.c.l.b16 %v560
    %v657 = vunpack.c.l.b16 %v561
    %v658 = vunpack.c.l.b16 %v562
    %v659 = vunpack.c.l.b16 %v563
    %v660 = vunpack.c.l.b16 %v564
    %v661 = vunpack.c.l.b16 %v565
    %v662 = vunpack.c.l.b16 %v566
    %v663 = vunpack.c.l.b16 %v567
    %v664 = vunpack.c.l.b16 %v568
    %v665 = vunpack.c.l.b16 %v569
    %v666 = vunpack.c.l.b16 %v570
    %v667 = vunpack.c.l.b16 %v571
    %v668 = vunpack.c.l.b16 %v572
    %v669 = vunpack.c.l.b16 %v573
    %v670 = vunpack.c.l.b16 %v574
    %v671 = vunpack.c.l.b16 %v575
    %v672 = vunpack.c.l.b16 %v576
    %v673 = vunpack.c.l.b16 %v577
    %v674 = vunpack.c.l.b16 %v578
    %v675 = vunpack.c.l.b16 %v579
    %v676 = vunpack.c.l.b16 %v580
    %v677 = vunpack.c.l.b16 %v581
    %v678 = vunpack.c.l.b16 %v582
    %v679 = vunpack.c.l.b16 %v583
    %v680 = vunpack.c.l.b16 %v584
    %v681 = vunpack.c.l.b16 %v585
    %v682 = vunpack.c.l.b16 %v586
    %v683 = vunpack.c.l.b16 %v587
    %v684 = vunpack.c.l.b16 %v588
    %v685 = vunpack.c.l.b16 %v589
    %v686 = vunpack.c.l.b16 %v590
    %v687 = vunpack.c.l.b16 %v591
    %v688 = vunpack.c.l.b16 %v592
    %v689 = vunpack.c.l.b16 %v593
    %v690 = vunpack.c.l.b16 %v594
    %v691 = vunpack.c.l.b16 %v595
    %v692 = vunpack.c.l.b16 %v596
    %v693 = vunpack.c.l.b16 %v597
    %v694 = vunpack.c.l.b16 %v598
    %v695 = vpack.c.b16 %v648, %v647
    %v696 = vpack.c.b16 %v650, %v649
    %v697 = vpack.c.b16 %v652, %v651
    %v698 = vpack.c.b16 %v654, %v653
    %v699 = vpack.c.b16 %v656, %v655
    %v700 = vpack.c.b16 %v658, %v657
    %v701 = vpack.c.b16 %v660, %v659
    %v702 = vpack.c.b16 %v662, %v661
    %v703 = vpack.c.b16 %v664, %v663
    %v704 = vpack.c.b16 %v666, %v665
    %v705 = vpack.c.b16 %v668, %v667
    %v706 = vpack.c.b16 %v670, %v669
    %v707 = vpack.c.b16 %v672, %v671
    %v708 = vpack.c.b16 %v674, %v673
    %v709 = vpack.c.b16 %v676, %v675
    %v710 = vpack.c.b16 %v678, %v677
    %v711 = vpack.c.b16 %v680, %v679
    %v712 = vpack.c.b16 %v682, %v681
    %v713 = vpack.c.b16 %v684, %v683
    %v714 = vpack.c.b16 %v686, %v685
    %v715 = vpack.c.b16 %v688, %v687
    %v716 = vpack.c.b16 %v690, %v689
    %v717 = vpack.c.b16 %v692, %v691
    %v718 = vpack.c.b16 %v694, %v693
    %743 = vmatprep.subr.bf16.mxu0 0
    %744 = vmatpush1.bf16.msra.mxu0 %v695
    %745 = vmatprep.subr.bf16.mxu0 0
    %746 = vmatpush1.bf16.msra.mxu0 %v696
    %747 = vmatprep.subr.bf16.mxu0 0
    %748 = vmatpush1.bf16.msra.mxu0 %v697
    %749 = vmatprep.subr.bf16.mxu0 0
    %750 = vmatpush1.bf16.msra.mxu0 %v698
    %751 = vmatprep.subr.bf16.mxu0 0
    %752 = vmatpush1.bf16.msra.mxu0 %v699
    %753 = vmatprep.subr.bf16.mxu0 0
    %754 = vmatpush1.bf16.msra.mxu0 %v700
    %755 = vmatprep.subr.bf16.mxu0 0
    %756 = vmatpush1.bf16.msra.mxu0 %v701
    %757 = vmatprep.subr.bf16.mxu0 0
    %758 = vmatpush1.bf16.msra.mxu0 %v702
    %759 = vmatprep.subr.bf16.mxu0 0
    %760 = vmatpush1.bf16.msra.mxu0 %v703
    %761 = vmatprep.subr.bf16.mxu0 0
    %762 = vmatpush1.bf16.msra.mxu0 %v704
    %763 = vmatprep.subr.bf16.mxu0 0
    %764 = vmatpush1.bf16.msra.mxu0 %v705
    %765 = vmatprep.subr.bf16.mxu0 0
    %766 = vmatpush1.bf16.msra.mxu0 %v706
    %767 = vmatprep.subr.bf16.mxu0 0
    %768 = vmatpush1.bf16.msra.mxu0 %v707
    %769 = vmatprep.subr.bf16.mxu0 0
    %770 = vmatpush1.bf16.msra.mxu0 %v708
    %771 = vmatprep.subr.bf16.mxu0 0
    %772 = vmatpush1.bf16.msra.mxu0 %v709
    %773 = vmatprep.subr.bf16.mxu0 0
    %774 = vmatpush1.bf16.msra.mxu0 %v710
    %775 = vmatprep.mubr.bf16.mxu0 %v549
    %776 = vmatmul.mubr.bf16.gmra.mrb[0].mxu0 %v548
    %v777 = vpop.f32.mrb[0].mxu0
    %v778 = vadd.f32 0.0, %v777
    %v779 = vpop.f32.mrb[0].mxu0
    %v780 = vpop.f32.mrb[0].mxu0
    %v781 = vpop.f32.mrb[0].mxu0
    %782 = vdwg.mxu0
    %783 = vmatprep.subr.bf16.mxu0 0
    %784 = vmatpush1.bf16.msra.mxu0 %v711
    %785 = vmatprep.subr.bf16.mxu0 0
    %786 = vmatpush1.bf16.msra.mxu0 %v712
    %787 = vmatprep.subr.bf16.mxu0 0
    %788 = vmatpush1.bf16.msra.mxu0 %v713
    %789 = vmatprep.subr.bf16.mxu0 0
    %790 = vmatpush1.bf16.msra.mxu0 %v714
    %791 = vmatprep.subr.bf16.mxu0 0
    %792 = vmatpush1.bf16.msra.mxu0 %v715
    %793 = vmatprep.subr.bf16.mxu0 0
    %794 = vmatpush1.bf16.msra.mxu0 %v716
    %795 = vmatprep.subr.bf16.mxu0 0
    %796 = vmatpush1.bf16.msra.mxu0 %v717
    %797 = vmatprep.subr.bf16.mxu0 0
    %798 = vmatpush1.bf16.msra.mxu0 %v718
    %799 = vmatprep.subr.bf16.mxu0 0
    %800 = vmatpush1.bf16.msra.mxu0 0
    %801 = vmatprep.subr.bf16.mxu0 0
    %802 = vmatpush1.bf16.msra.mxu0 0
    %803 = vmatprep.subr.bf16.mxu0 0
    %804 = vmatpush1.bf16.msra.mxu0 0
    %805 = vmatprep.subr.bf16.mxu0 0
    %806 = vmatpush1.bf16.msra.mxu0 0
    %807 = vmatprep.subr.bf16.mxu0 0
    %808 = vmatpush1.bf16.msra.mxu0 0
    %809 = vmatprep.subr.bf16.mxu0 0
    %810 = vmatpush1.bf16.msra.mxu0 0
    %811 = vmatprep.subr.bf16.mxu0 0
    %812 = vmatpush1.bf16.msra.mxu0 0
    %813 = vmatprep.subr.bf16.mxu0 0
    %814 = vmatpush1.bf16.msra.mxu0 0
    %815 = vmatprep.mubr.bf16.mxu0 0
    %816 = vmatmul.mubr.bf16.gmra.mrb[0].mxu0 %v550
    %v817 = vpop.f32.mrb[0].mxu0
    %v818 = vadd.f32 %v778, %v817
    %v819 = vpop.f32.mrb[0].mxu0
    %v820 = vpop.f32.mrb[0].mxu0
    %v821 = vpop.f32.mrb[0].mxu0
    %822 = vdwg.mxu0
    %v823 = vmax.f32 %v818, 0.0
    %v824 = vpack.c.bf16 %v823, %v823
    %v825 = vld [vmem:[#allocation7] sm:$0xf]
    %v826 = vld [vmem:[#allocation7 + $0x4] sm:$0xf]
    %v827 = vld [vmem:[#allocation7 + $0x8] sm:$0xf]
    %v828 = vld [vmem:[#allocation7 + $0xc] sm:$0xf]
    %v829 = vld [vmem:[#allocation7 + $0x10] sm:$0xf]
    %v830 = vld [vmem:[#allocation7 + $0x14] sm:$0xf]
    %v831 = vld [vmem:[#allocation7 + $0x18] sm:$0xf]
    %v832 = vld [vmem:[#allocation7 + $0x1c] sm:$0xf]
    %v833 = vld [vmem:[#allocation7 + $0x20] sm:$0xf]
    %v834 = vld [vmem:[#allocation7 + $0x24] sm:$0xf]
    %v835 = vld [vmem:[#allocation7 + $0x28] sm:$0xf]
    %v836 = vld [vmem:[#allocation7 + $0x2c] sm:$0xf]
    %v837 = vld [vmem:[#allocation7 + $0x30] sm:$0xf]
    %v838 = vld [vmem:[#allocation7 + $0x34] sm:$0xf]
    %v839 = vld [vmem:[#allocation7 + $0x38] sm:$0xf]
    %v840 = vld [vmem:[#allocation7 + $0x3c] sm:$0xf]
    %v857 = vunpack.c.l.b16 %v825
    %v858 = vunpack.c.l.b16 %v826
    %v859 = vunpack.c.l.b16 %v827
    %v860 = vunpack.c.l.b16 %v828
    %v861 = vunpack.c.l.b16 %v829
    %v862 = vunpack.c.l.b16 %v830
    %v863 = vunpack.c.l.b16 %v831
    %v864 = vunpack.c.l.b16 %v832
    %v865 = vunpack.c.l.b16 %v833
    %v866 = vunpack.c.l.b16 %v834
    %v867 = vunpack.c.l.b16 %v835
    %v868 = vunpack.c.l.b16 %v836
    %v869 = vunpack.c.l.b16 %v837
    %v870 = vunpack.c.l.b16 %v838
    %v871 = vunpack.c.l.b16 %v839
    %v872 = vunpack.c.l.b16 %v840
    %v873 = vpack.c.b16 %v858, %v857
    %v874 = vpack.c.b16 %v860, %v859
    %v875 = vpack.c.b16 %v862, %v861
    %v876 = vpack.c.b16 %v864, %v863
    %v877 = vpack.c.b16 %v866, %v865
    %v878 = vpack.c.b16 %v868, %v867
    %v879 = vpack.c.b16 %v870, %v869
    %v880 = vpack.c.b16 %v872, %v871
    %889 = vmatprep.subr.bf16.mxu0 0
    %890 = vmatpush1.bf16.msra.mxu0 %v873
    %891 = vmatprep.subr.bf16.mxu0 0
    %892 = vmatpush1.bf16.msra.mxu0 %v874
    %893 = vmatprep.subr.bf16.mxu0 0
    %894 = vmatpush1.bf16.msra.mxu0 %v875
    %895 = vmatprep.subr.bf16.mxu0 0
    %896 = vmatpush1.bf16.msra.mxu0 %v876
    %897 = vmatprep.subr.bf16.mxu0 0
    %898 = vmatpush1.bf16.msra.mxu0 %v877
    %899 = vmatprep.subr.bf16.mxu0 0
    %900 = vmatpush1.bf16.msra.mxu0 %v878
    %901 = vmatprep.subr.bf16.mxu0 0
    %902 = vmatpush1.bf16.msra.mxu0 %v879
    %903 = vmatprep.subr.bf16.mxu0 0
    %904 = vmatpush1.bf16.msra.mxu0 %v880
    %905 = vmatprep.subr.bf16.mxu0 0
    %906 = vmatpush1.bf16.msra.mxu0 0
    %907 = vmatprep.subr.bf16.mxu0 0
    %908 = vmatpush1.bf16.msra.mxu0 0
    %909 = vmatprep.subr.bf16.mxu0 0
    %910 = vmatpush1.bf16.msra.mxu0 0
    %911 = vmatprep.subr.bf16.mxu0 0
    %912 = vmatpush1.bf16.msra.mxu0 0
    %913 = vmatprep.subr.bf16.mxu0 0
    %914 = vmatpush1.bf16.msra.mxu0 0
    %915 = vmatprep.subr.bf16.mxu0 0
    %916 = vmatpush1.bf16.msra.mxu0 0
    %917 = vmatprep.subr.bf16.mxu0 0
    %918 = vmatpush1.bf16.msra.mxu0 0
    %919 = vmatprep.subr.bf16.mxu0 0
    %920 = vmatpush1.bf16.msra.mxu0 0
    %921 = vmatprep.mubr.bf16.mxu0 0
    %922 = vmatmul.mubr.bf16.gmra.mrb[0].mxu0 %v824
    %v923 = vpop.f32.mrb[0].mxu0
    %v924 = vadd.f32 0.0, %v923
    %v925 = vpop.f32.mrb[0].mxu0
    %v926 = vpop.f32.mrb[0].mxu0
    %v927 = vpop.f32.mrb[0].mxu0
    %928 = vdwg.mxu0
    %v929 = vld [vmem:[#allocation2] sm:$0x1]
    %v931 = vlaneseq
    %v932 = vshrl.u32 %v931, 7
    %v933 = vsub.s32 0, %v932
    %v934 = vrot.slane %v929, %v933
    %v936 = vadd.f32 %v924, %v934
    %vm937 = vcmask 7168
    %938 = vst.msk [vmem:[%s5] sm:$0xff] %vm937, %v936
    // Predicated region
    $region34: #{net_forward.1} parent=1 // pred_check
      _
    $region35: #{net_forward.1} parent=1 // pred_check_branch
      %940 = sbr.rel (0) target = $region37
    $region36: #{net_forward.1} parent=1 // pred_region
      _
    $region37: #{net_forward.1} parent=1 // pred_fallthru
      _
    // Predicated region
    $region38: #{net_forward.1} parent=1 // pred_check
      _
    $region39: #{net_forward.1} parent=1 // pred_check_branch
      %942 = sbr.rel (0) target = $region41
    $region40: #{net_forward.1} parent=1 // pred_region
      _
    $region41: #{net_forward.1} parent=1 // pred_fallthru
      _
    %943 = vsyncpa [#allocation4], 1
    %944 = vsyncpa [#allocation6], 1

</llo_original>
